<compile_context>
chip_gen: v7x
topology: tpu7x:2x2x1
jax: 0.10.0
libtpu: 0.0.40
codegen_flags: <defaults>
</compile_context>

<pallas_src>
import functools
import math

import jax
import jax.numpy as jnp
from jax.experimental import pallas as pl
from jax.experimental.pallas import tpu as pltpu

MIN_NORM = 1e-15
BALL_EPS = 4e-3        # PoincareBall proj eps for float32 (hgcn manifolds/poincare.py)
ARTANH_EPS = 1e-7      # float32-meaningful clamp (PyTorch's 1e-15 is a no-op in f32)


# ---------------- Poincare-ball math (wrapper-side prep + plain-JAX reference) ----------------

def _artanh(x):
    x = jnp.clip(x, -1.0 + ARTANH_EPS, 1.0 - ARTANH_EPS)
    return 0.5 * jnp.log((1.0 + x) / (1.0 - x))


def _rownorm(x):
    return jnp.maximum(jnp.sqrt(jnp.sum(x * x, axis=-1, keepdims=True)), MIN_NORM)


def _proj(x, c):
    norm = _rownorm(x)
    maxnorm = (1.0 - BALL_EPS) / math.sqrt(c)
    return jnp.where(norm > maxnorm, x * (maxnorm / norm), x)


def _expmap0(u, c):
    sqrt_c = math.sqrt(c)
    u_norm = _rownorm(u)
    return jnp.tanh(sqrt_c * u_norm) * u / (sqrt_c * u_norm)


def _logmap0(p, c):
    sqrt_c = math.sqrt(c)
    p_norm = _rownorm(p)
    return _artanh(sqrt_c * p_norm) * p / (sqrt_c * p_norm)


def _mobius_add(x, y, c):
    x2 = jnp.sum(x * x, axis=-1, keepdims=True)
    y2 = jnp.sum(y * y, axis=-1, keepdims=True)
    xy = jnp.sum(x * y, axis=-1, keepdims=True)
    num = (1.0 + 2.0 * c * xy + c * y2) * x + (1.0 - c * x2) * y
    denom = jnp.maximum(1.0 + 2.0 * c * xy + c * c * x2 * y2, MIN_NORM)
    return num / denom


# ---------------- Pallas kernels ----------------

def _hyp_linear_logmap_kernel(x_ref, wt_ref, hb_ref, hb2_ref, o_ref, *, c, mxu_dtype):
    """HypLinear (mobius_matvec + proj + mobius_add(bias) + proj) fused with the logmap0
    that starts the following HypAgg.  All hyperbolic ops are composed as per-row (tm,1)
    scales; the (tm,F) tile is touched by the matmul, two cross-lane reductions, and a
    single final alpha*mx + beta*hyp_bias pass."""
    sqrt_c = math.sqrt(c)
    maxnorm = (1.0 - BALL_EPS) / sqrt_c

    x = x_ref[...]                       # (tm, Fin) f32 ball points
    hb = hb_ref[...]                     # (1, Fout) f32: proj(expmap0(bias))
    hb2 = hb2_ref[0]                     # scalar ||hyp_bias||^2 (hoisted, SMEM)

    # mobius_matvec: MXU matmul (bf16 operands, f32 accumulation) + per-row scale.
    x_norm = jnp.maximum(jnp.sqrt(jnp.sum(x * x, axis=-1, keepdims=True)), MIN_NORM)
    mx = jnp.dot(x.astype(mxu_dtype), wt_ref[...],
                 preferred_element_type=jnp.float32)             # (tm, Fout) f32

    mx_sumsq = jnp.sum(mx * mx, axis=-1, keepdims=True)           # (tm, 1)
    mx_hb = jnp.sum(mx * hb, axis=-1, keepdims=True)              # (tm, 1) <mx, hyp_bias>
    mx_norm = jnp.maximum(jnp.sqrt(mx_sumsq), MIN_NORM)

    # res = s_mv * mx ; zero-row guard folded into the per-row scale.
    s_mv = jnp.tanh(mx_norm / x_norm * _artanh(sqrt_c * x_norm)) / (mx_norm * sqrt_c)
    s_mv = jnp.where(mx_sumsq == 0.0, 0.0, s_mv)
    # proj: analytic norm of res is s_mv * mx_norm (s_mv >= 0).
    res_norm = s_mv * mx_norm
    s_mv = jnp.where(res_norm > maxnorm,
                     s_mv * (maxnorm / jnp.maximum(res_norm, MIN_NORM)), s_mv)
    xn = jnp.minimum(res_norm, maxnorm)                           # norm after proj

    # mobius_add(res, hyp_bias): all coefficients per-row, norms analytic.
    x2 = xn * xn
    xy = s_mv * mx_hb
    denom = jnp.maximum(1.0 + 2.0 * c * xy + (c * c) * x2 * hb2, MIN_NORM)
    inv_denom = 1.0 / denom
    coef_x = (1.0 + 2.0 * c * xy + c * hb2) * inv_denom           # multiplies res
    coef_y = (1.0 - c * x2) * inv_denom                           # multiplies hyp_bias

    # ||coef_x*res + coef_y*hb||^2 from the per-row scalars we already have.
    add_sq = coef_x * coef_x * x2 + 2.0 * coef_x * coef_y * xy + coef_y * coef_y * hb2
    add_norm = jnp.maximum(jnp.sqrt(jnp.maximum(add_sq, 0.0)), MIN_NORM)
    # second proj
    s_proj2 = jnp.where(add_norm > maxnorm, maxnorm / add_norm, 1.0)
    pn = jnp.maximum(jnp.minimum(add_norm, maxnorm), MIN_NORM)

    # Fused epilogue: HypAgg's logmap0 of the HypLinear output (pure per-row scale).
    s_log = _artanh(sqrt_c * pn) / (sqrt_c * pn)

    alpha = s_log * s_proj2 * coef_x * s_mv
    beta = s_log * s_proj2 * coef_y
    # Single full-width pass over the (tm, Fout) tile (output stored lane-dense).
    o_ref[...] = (alpha * mx + beta * hb).astype(o_ref.dtype)


def _hyp_agg_act_kernel(t_ref, adj_ref, o_ref, acc_ref, *, c_in, c_out):
    """HypAgg (K-tiled adj @ tangent with an f32 VMEM accumulator) fused with
    HypAct(ReLU).  Epilogue uses per-row scale composition; ReLU commutes with the
    non-negative scale, so the (tm,F) tile is touched only for relu + one reduction
    + one final scale-multiply."""
    k = pl.program_id(1)

    @pl.when(k == 0)
    def _init():
        acc_ref[...] = jnp.zeros_like(acc_ref)

    # support_t += adj_tile @ tangent_tile   (bf16 operands, f32 accumulation)
    acc_ref[...] += jnp.dot(adj_ref[...], t_ref[...],
                            preferred_element_type=jnp.float32)

    @pl.when(k == pl.num_programs(1) - 1)
    def _epilogue():
        sqrt_ci = math.sqrt(c_in)
        sqrt_co = math.sqrt(c_out)
        maxnorm_i = (1.0 - BALL_EPS) / sqrt_ci
        maxnorm_o = (1.0 - BALL_EPS) / sqrt_co

        u = acc_ref[...]                                          # (tm, F) f32
        u_norm = jnp.maximum(
            jnp.sqrt(jnp.sum(u * u, axis=-1, keepdims=True)), MIN_NORM)

        # HypAgg tail: proj(expmap0(u, c_in), c_in) as per-row scales.
        en = jnp.tanh(sqrt_ci * u_norm) / sqrt_ci                 # norm after expmap0
        e1 = en / u_norm
        p1 = jnp.where(en > maxnorm_i, maxnorm_i / en, 1.0)
        an = jnp.maximum(jnp.minimum(en, maxnorm_i), MIN_NORM)    # norm after proj
        # HypAct: logmap0(c_in) scale.
        l1 = _artanh(sqrt_ci * an) / (sqrt_ci * an)

        s_tan = l1 * p1 * e1                                      # >= 0 per-row
        # ReLU commutes with the non-negative per-row scale: relu(s*u) = s*relu(u).
        rel = jnp.maximum(u, 0.0)
        rel_norm = jnp.sqrt(jnp.sum(rel * rel, axis=-1, keepdims=True))
        xt_norm = jnp.maximum(s_tan * rel_norm, MIN_NORM)

        # proj_tan0 (identity) -> expmap0(c_out) -> proj(c_out), per-row scales.
        on = jnp.tanh(sqrt_co * xt_norm) / sqrt_co
        e2 = on / xt_norm
        p2 = jnp.where(on > maxnorm_o, maxnorm_o / on, 1.0)

        o_ref[...] = ((p2 * e2 * s_tan) * rel).astype(o_ref.dtype)


# ---------------- tiling helpers ----------------

def _pick_row_tile(n, tm_default):
    """Row tile: multiple of 8 (or full N), and >= 2 tiles when N allows so the
    "parallel" axis shards across v7x's two TensorCores."""
    tm = min(tm_default, n)
    while tm > 8 and n % tm != 0:
        tm -= 8
    if n % tm != 0:
        tm = n
    if n // tm < 2 and n % 2 == 0 and (n // 2) % 8 == 0:
        tm = n // 2
    return tm


def _pick_k_tile(n, tk_default):
    """K tile: multiple of 128 dividing N, else fall back to the full extent."""
    tk = min(tk_default, n)
    if tk == n:
        return tk
    tk = (tk // 128) * 128
    while tk >= 128 and n % tk != 0:
        tk -= 128
    if tk < 128 or n % tk != 0:
        tk = n
    return tk


def _pad_lanes(a, multiple=128):
    """Zero-pad the last (lane) dim to a multiple of 128 for lane-dense stores.
    Exact: padded columns stay identically zero through every per-row scaling."""
    pad = (-a.shape[-1]) % multiple
    if pad == 0:
        return a
    return jnp.pad(a, ((0, 0), (0, pad)))


# ---------------- wrappers ----------------

def hyp_linear_logmap(x, w_t, hyp_bias, hb2, c, *, tm=512, mxu_dtype=jnp.bfloat16):
    """x: (N, Fin) f32 ball points; w_t: (Fin, Fout) in mxu_dtype; hyp_bias: (1, Fout) f32;
    hb2: (1,) f32 = ||hyp_bias||^2.  Returns logmap0(HypLinear(x), c) as (N, Fout) tangent
    vectors, stored in bf16 when mxu_dtype is bf16 (halves t write + re-read traffic)."""
    x = x.astype(jnp.float32)
    n, fin = x.shape
    fout = w_t.shape[1]
    tm = _pick_row_tile(n, tm)
    assert n % tm == 0, f"N={n} must be divisible by tm={tm}"
    out_dtype = (jnp.bfloat16 if jnp.dtype(mxu_dtype) == jnp.dtype(jnp.bfloat16)
                 else jnp.float32)

    kernel = functools.partial(_hyp_linear_logmap_kernel, c=c, mxu_dtype=mxu_dtype)
    return pl.pallas_call(
        kernel,
        out_shape=jax.ShapeDtypeStruct((n, fout), out_dtype),
        grid=(n // tm,),
        in_specs=[
            pl.BlockSpec((tm, fin), lambda i: (i, 0)),     # row tile of x
            pl.BlockSpec((fin, fout), lambda i: (0, 0)),   # weight resident (small)
            pl.BlockSpec((1, fout), lambda i: (0, 0)),     # precomputed hyperbolic bias
            pl.BlockSpec(memory_space=pltpu.MemorySpace.SMEM),  # ||hyp_bias||^2 scalar
        ],
        out_specs=pl.BlockSpec((tm, fout), lambda i: (i, 0)),
        compiler_params=pltpu.CompilerParams(dimension_semantics=("parallel",)),
    )(x, w_t.astype(mxu_dtype), hyp_bias.astype(jnp.float32), hb2.astype(jnp.float32))


def hyp_agg_act(t, adj_mxu, c_in, c_out, *, tm=512, tk=1024, mxu_dtype=jnp.bfloat16):
    """t: (N, F) tangent matrix (already in mxu_dtype); adj_mxu: (N, N) row-normalized
    dense adjacency already cast HBM-side to mxu_dtype.  Returns (N, F) f32 ball points
    at curvature c_out (HypAct(HypAgg(...)))."""
    n, f = t.shape
    t = t.astype(mxu_dtype)            # no-op in the default path (cast done HBM-side)
    tm = _pick_row_tile(n, tm)
    elem = jnp.dtype(mxu_dtype).itemsize

    def _need(tk_):                    # double-buffered inputs + f32 acc + 2x out tile
        return 2 * (tm * tk_ + tk_ * f) * elem + 3 * tm * f * 4

    # Resident-t fast path: if the whole tangent matrix fits a conservative budget
    # (safe on v7x's 64 MiB physical VMEM), use tk = N -> the t block index is constant
    # across the grid, so t is DMA'd once and only adj streams.
    if _need(n) <= (28 << 20):
        tk = n
    else:
        tk = _pick_k_tile(n, tk)
    assert n % tm == 0 and n % tk == 0, f"N={n} must be divisible by tm={tm}, tk={tk}"

    # v5e's default scoped VMEM is 16 MiB; derive the limit from the real footprint,
    # capped at v7x's 64 MiB physical VMEM.
    vmem_limit = int(min(max(_need(tk) * 3 // 2, 32 << 20), 64 << 20))

    kernel = functools.partial(_hyp_agg_act_kernel, c_in=c_in, c_out=c_out)
    return pl.pallas_call(
        kernel,
        out_shape=jax.ShapeDtypeStruct((n, f), jnp.float32),
        grid=(n // tm, n // tk),                               # reduction axis last
        in_specs=[
            pl.BlockSpec((tk, f), lambda i, k: (k, 0)),        # tangent K-tile
            pl.BlockSpec((tm, tk), lambda i, k: (i, k)),       # adjacency tile
        ],
        out_specs=pl.BlockSpec((tm, f), lambda i, k: (i, 0)),  # same block across k
        scratch_shapes=[pltpu.VMEM((tm, f), jnp.float32)],     # f32 accumulator
        compiler_params=pltpu.CompilerParams(
            dimension_semantics=("parallel", "arbitrary"),
            vmem_limit_bytes=vmem_limit),
    )(t, adj_mxu)


def hyperbolic_hgnn_conv(x, adj, params, c_in, c_out, *, tm=512, tk=1024,
                         mxu_dtype=jnp.bfloat16):
    """Forward of HyperbolicHGNNConv (dropout=0.0, use_att=False, local_agg=False).

    Weights are stored (out_features, in_features) exactly like torch.nn.Linear.
    NOTE: as in the PyTorch module, both HypLinear layers and both HypAgg layers use
    curvature c_in even though HypAct maps onto the c_out ball.
    mxu_dtype controls the MXU-operand / streamed-tangent precision only; all norms,
    hyperbolic math and matmul accumulation stay f32."""
    fout = params["w_out"].shape[0]

    # One-time HBM-side parameter prep (hoisted out of the kernels):
    #  - transpose weights to (Fin, Fout), pad narrow output dims to 128 lanes,
    #    cast matmul operands to mxu_dtype
    #  - map biases onto the ball: proj_tan0 (identity) -> expmap0 -> proj, and
    #    precompute their squared norms (loop-invariant SMEM scalars)
    w_hid_t = _pad_lanes(jnp.transpose(params["w_hid"]).astype(jnp.float32)).astype(mxu_dtype)
    w_out_t = _pad_lanes(jnp.transpose(params["w_out"]).astype(jnp.float32)).astype(mxu_dtype)
    hb_hid = _pad_lanes(_proj(_expmap0(params["b_hid"].astype(jnp.float32), c_in), c_in))
    hb_out = _pad_lanes(_proj(_expmap0(params["b_out"].astype(jnp.float32), c_in), c_in))
    hb2_hid = jnp.sum(hb_hid * hb_hid).reshape((1,))
    hb2_out = jnp.sum(hb_out * hb_out).reshape((1,))

    # HBM-side cast of the adjacency (used by both aggregation calls): halves DMA
    # traffic for the dominant adj stream when mxu_dtype is bf16.
    adj_mxu = adj.astype(mxu_dtype)

    # Layer 1: HypLinear(in->512) fused with the agg's logmap0, then agg+act.
    t = hyp_linear_logmap(x, w_hid_t, hb_hid, hb2_hid, c_in, tm=tm, mxu_dtype=mxu_dtype)
    h = hyp_agg_act(t, adj_mxu, c_in, c_out, tm=tm, tk=tk, mxu_dtype=mxu_dtype)
    # F.dropout(h, 0.0) -> identity
    # Layer 2: HypLinear(512->out) fused with the agg's logmap0, then agg+act.
    t = hyp_linear_logmap(h, w_out_t, hb_out, hb2_out, c_in, tm=tm, mxu_dtype=mxu_dtype)
    h = hyp_agg_act(t, adj_mxu, c_in, c_out, tm=tm, tk=tk, mxu_dtype=mxu_dtype)

    # Slice off the lane padding (padded columns are identically zero).
    return h[:, :fout], adj


# ---------------- plain-JAX reference (for validation only) ----------------

def _ref_hyp_linear(x, w, b, c):
    sqrt_c = math.sqrt(c)
    x_norm = _rownorm(x)
    mx = x @ w.T
    mx_norm = _rownorm(mx)
    res = jnp.tanh(mx_norm / x_norm * _artanh(sqrt_c * x_norm)) * mx / (mx_norm * sqrt_c)
    zero_row = jnp.all(mx == 0.0, axis=-1, keepdims=True)
    res = jnp.where(zero_row, jnp.zeros_like(res), res)
    res = _proj(res, c)
    hyp_bias = _proj(_expmap0(b, c), c)
    return _proj(_mobius_add(res, hyp_bias, c), c)


def _ref_agg_act(h, adj, c_in, c_out):
    support_t = adj @ _logmap0(h, c_in)
    agg = _proj(_expmap0(support_t, c_in), c_in)
    xt = jnp.maximum(_logmap0(agg, c_in), 0.0)
    return _proj(_expmap0(xt, c_out), c_out)


def _reference_forward(x, adj, params, c_in, c_out):
    h = _ref_hyp_linear(x, params["w_hid"], params["b_hid"], c_in)
    h = _ref_agg_act(h, adj, c_in, c_out)
    h = _ref_hyp_linear(h, params["w_out"], params["b_out"], c_in)
    h = _ref_agg_act(h, adj, c_in, c_out)
    return h, adj


# ---------------- demo ----------------

if __name__ == "__main__":
    N, F_IN, HID, F_OUT = 64, 64, 512, 64    # HID=512 is hardcoded in the module
    c_in, c_out = 1.0, 1.0

    key = jax.random.PRNGKey(0)
    k_feat, k_adj, k_w1, k_w2 = jax.random.split(key, 4)

    # Input points on the Poincare ball (tangent features -> expmap0 -> proj).
    feats = 0.1 * jax.random.normal(k_feat, (N, F_IN), dtype=jnp.float32)
    x = _proj(_expmap0(feats, c_in), c_in)

    # Row-normalized random adjacency (dense stand-in for torch.spmm's sparse adj).
    a = (jax.random.uniform(k_adj, (N, N)) < 0.2).astype(jnp.float32) + jnp.eye(N, dtype=jnp.float32)
    adj = a / jnp.sum(a, axis=1, keepdims=True)

    # Parameters: xavier_uniform_(gain=sqrt(2)) weights, zero biases (reset_parameters).
    b1 = math.sqrt(2.0) * math.sqrt(6.0 / (F_IN + HID))
    b2 = math.sqrt(2.0) * math.sqrt(6.0 / (HID + F_OUT))
    params = {
        "w_hid": jax.random.uniform(k_w1, (HID, F_IN), jnp.float32, minval=-b1, maxval=b1),
        "b_hid": jnp.zeros((1, HID), jnp.float32),
        "w_out": jax.random.uniform(k_w2, (F_OUT, HID), jnp.float32, minval=-b2, maxval=b2),
        "b_out": jnp.zeros((1, F_OUT), jnp.float32),
    }

    ref, _ = _reference_forward(x, adj, params, c_in, c_out)

    # Default fast path: bf16 MXU operands / bf16 streamed tangents, f32 accumulation.
    h_bf16, adj_out = hyperbolic_hgnn_conv(x, adj, params, c_in, c_out)
    jax.block_until_ready(h_bf16)
    assert h_bf16.shape == (N, F_OUT) and h_bf16.dtype == jnp.float32
    assert bool(jnp.all(jnp.isfinite(h_bf16)))
    err_bf16 = float(jnp.max(jnp.abs(ref - h_bf16)))
    assert err_bf16 < 5e-2, f"bf16 path mismatch vs reference: max abs err = {err_bf16}"

    # Full-f32 path (tight check of the restructured per-row-scale math).
    h_f32, _ = hyperbolic_hgnn_conv(x, adj, params, c_in, c_out, mxu_dtype=jnp.float32)
    jax.block_until_ready(h_f32)
    err_f32 = float(jnp.max(jnp.abs(ref - h_f32)))
    assert err_f32 < 2e-3, f"f32 path mismatch vs reference: max abs err = {err_f32}"

    # TODO(synk): use_att/local_agg (DenseAtt) branch of HypAgg not implemented (use_att=False here).
    print("KERNEL_OK")
</pallas_src>

<mosaic_0001>
module attributes {stable_mosaic.version = 11 : i64} {
  func.func @_hyp_linear_logmap_kernel(%arg0: i32, %arg1: memref<32x64xf32, #tpu.memory_space<vmem>>, %arg2: memref<64x512xbf16, #tpu.memory_space<vmem>>, %arg3: memref<1x512xf32, #tpu.memory_space<vmem>>, %arg4: memref<1xf32, #tpu.memory_space<smem>>, %arg5: memref<32x512xbf16, #tpu.memory_space<vmem>>) attributes {dimension_semantics = [#tpu.dimension_semantics<parallel>], iteration_bounds = array<i64: 2>, scalar_prefetch = 0 : i64, scratch_operands = 0 : i64, tpu.core_type = #tpu.core_type<tc>, window_params = [{transform_indices = @transform_0, window_bounds = array<i64: 32, 64>}, {pipeline_mode = #tpu.pipeline_mode<synchronous>, transform_indices = @transform_1, window_bounds = array<i64: 64, 512>}, {pipeline_mode = #tpu.pipeline_mode<synchronous>, transform_indices = @transform_2, window_bounds = array<i64: 1, 512>}, {transform_indices = @transform_3, window_bounds = array<i64: 1>}, {transform_indices = @transform_4, window_bounds = array<i64: 32, 512>}]} {
    %c0 = arith.constant 0 : index
    %c0_0 = arith.constant 0 : index
    %0 = vector.load %arg1[%c0, %c0_0] : memref<32x64xf32, #tpu.memory_space<vmem>>, vector<32x64xf32>
    %c0_1 = arith.constant 0 : index
    %c0_2 = arith.constant 0 : index
    %1 = vector.load %arg3[%c0_1, %c0_2] : memref<1x512xf32, #tpu.memory_space<vmem>>, vector<1x512xf32>
    %c0_3 = arith.constant 0 : index
    %2 = memref.load %arg4[%c0_3] : memref<1xf32, #tpu.memory_space<smem>>
    %3 = arith.mulf %0, %0 : vector<32x64xf32>
    %cst = arith.constant dense<0.000000e+00> : vector<32xf32>
    %4 = vector.multi_reduction <add>, %3, %cst [1] : vector<32x64xf32> to vector<32xf32>
    %5 = vector.shape_cast %4 : vector<32xf32> to vector<32x1xf32>
    %6 = math.sqrt %5 : vector<32x1xf32>
    %cst_4 = arith.constant 1.000000e-15 : f32
    %7 = vector.broadcast %cst_4 : f32 to vector<32x1xf32>
    %8 = arith.maximumf %6, %7 : vector<32x1xf32>
    %9 = arith.truncf %0 : vector<32x64xf32> to vector<32x64xbf16>
    %c0_5 = arith.constant 0 : index
    %c0_6 = arith.constant 0 : index
    %10 = vector.load %arg2[%c0_5, %c0_6] : memref<64x512xbf16, #tpu.memory_space<vmem>>, vector<64x512xbf16>
    %cst_7 = arith.constant dense<0.000000e+00> : vector<32x512xf32>
    %11 = tpu.matmul %9, %10, %cst_7 {dimension_numbers = #tpu.dot_dimension_numbers<[1], [0], [0], [1], [0, 0, 1, 1], [], []>} : vector<32x64xbf16>, vector<64x512xbf16>, vector<32x512xf32> -> vector<32x512xf32>
    %12 = arith.mulf %11, %11 : vector<32x512xf32>
    %cst_8 = arith.constant dense<0.000000e+00> : vector<32xf32>
    %13 = vector.multi_reduction <add>, %12, %cst_8 [1] : vector<32x512xf32> to vector<32xf32>
    %14 = vector.shape_cast %13 : vector<32xf32> to vector<32x1xf32>
    %15 = vector.broadcast %1 : vector<1x512xf32> to vector<32x512xf32>
    %16 = arith.mulf %11, %15 : vector<32x512xf32>
    %cst_9 = arith.constant dense<0.000000e+00> : vector<32xf32>
    %17 = vector.multi_reduction <add>, %16, %cst_9 [1] : vector<32x512xf32> to vector<32xf32>
    %18 = vector.shape_cast %17 : vector<32xf32> to vector<32x1xf32>
    %19 = math.sqrt %14 : vector<32x1xf32>
    %cst_10 = arith.constant 1.000000e-15 : f32
    %20 = vector.broadcast %cst_10 : f32 to vector<32x1xf32>
    %21 = arith.maximumf %19, %20 : vector<32x1xf32>
    %22 = arith.divf %21, %8 : vector<32x1xf32>
    %cst_11 = arith.constant 1.000000e+00 : f32
    %23 = vector.broadcast %cst_11 : f32 to vector<32x1xf32>
    %24 = arith.mulf %23, %8 : vector<32x1xf32>
    %cst_12 = arith.constant -0.99999988 : f32
    %cst_13 = arith.constant 0.99999988 : f32
    %25 = vector.broadcast %cst_12 : f32 to vector<32x1xf32>
    %26 = arith.maximumf %25, %24 : vector<32x1xf32>
    %27 = vector.broadcast %cst_13 : f32 to vector<32x1xf32>
    %28 = arith.minimumf %27, %26 : vector<32x1xf32>
    %cst_14 = arith.constant 1.000000e+00 : f32
    %29 = vector.broadcast %cst_14 : f32 to vector<32x1xf32>
    %30 = arith.addf %29, %28 : vector<32x1xf32>
    %cst_15 = arith.constant 1.000000e+00 : f32
    %31 = vector.broadcast %cst_15 : f32 to vector<32x1xf32>
    %32 = arith.subf %31, %28 : vector<32x1xf32>
    %33 = arith.divf %30, %32 : vector<32x1xf32>
    %34 = math.log %33 : vector<32x1xf32>
    %cst_16 = arith.constant 5.000000e-01 : f32
    %35 = vector.broadcast %cst_16 : f32 to vector<32x1xf32>
    %36 = arith.mulf %35, %34 : vector<32x1xf32>
    %37 = arith.mulf %22, %36 : vector<32x1xf32>
    %38 = math.tanh %37 : vector<32x1xf32>
    %cst_17 = arith.constant 1.000000e+00 : f32
    %39 = vector.broadcast %cst_17 : f32 to vector<32x1xf32>
    %40 = arith.mulf %21, %39 : vector<32x1xf32>
    %41 = arith.divf %38, %40 : vector<32x1xf32>
    %cst_18 = arith.constant 0.000000e+00 : f32
    %42 = vector.broadcast %cst_18 : f32 to vector<32x1xf32>
    %43 = arith.cmpf oeq, %14, %42 : vector<32x1xf32>
    %cst_19 = arith.constant 0.000000e+00 : f32
    %44 = vector.broadcast %cst_19 : f32 to vector<32x1xf32>
    %45 = arith.select %43, %44, %41 : vector<32x1xi1>, vector<32x1xf32>
    %46 = arith.mulf %45, %21 : vector<32x1xf32>
    %cst_20 = arith.constant 0.995999991 : f32
    %47 = vector.broadcast %cst_20 : f32 to vector<32x1xf32>
    %48 = arith.cmpf ogt, %46, %47 : vector<32x1xf32>
    %cst_21 = arith.constant 1.000000e-15 : f32
    %49 = vector.broadcast %cst_21 : f32 to vector<32x1xf32>
    %50 = arith.maximumf %46, %49 : vector<32x1xf32>
    %cst_22 = arith.constant 0.995999991 : f32
    %51 = vector.broadcast %cst_22 : f32 to vector<32x1xf32>
    %52 = arith.divf %51, %50 : vector<32x1xf32>
    %53 = arith.mulf %45, %52 : vector<32x1xf32>
    %54 = arith.select %48, %53, %45 : vector<32x1xi1>, vector<32x1xf32>
    %cst_23 = arith.constant 0.995999991 : f32
    %55 = vector.broadcast %cst_23 : f32 to vector<32x1xf32>
    %56 = arith.minimumf %46, %55 : vector<32x1xf32>
    %57 = arith.mulf %56, %56 : vector<32x1xf32>
    %58 = arith.mulf %54, %18 : vector<32x1xf32>
    %cst_24 = arith.constant 2.000000e+00 : f32
    %59 = vector.broadcast %cst_24 : f32 to vector<32x1xf32>
    %60 = arith.mulf %59, %58 : vector<32x1xf32>
    %cst_25 = arith.constant 1.000000e+00 : f32
    %61 = vector.broadcast %cst_25 : f32 to vector<32x1xf32>
    %62 = arith.addf %61, %60 : vector<32x1xf32>
    %cst_26 = arith.constant 1.000000e+00 : f32
    %63 = vector.broadcast %cst_26 : f32 to vector<32x1xf32>
    %64 = arith.mulf %63, %57 : vector<32x1xf32>
    %65 = vector.broadcast %2 : f32 to vector<32x1xf32>
    %66 = arith.mulf %64, %65 : vector<32x1xf32>
    %67 = arith.addf %62, %66 : vector<32x1xf32>
    %cst_27 = arith.constant 1.000000e-15 : f32
    %68 = vector.broadcast %cst_27 : f32 to vector<32x1xf32>
    %69 = arith.maximumf %67, %68 : vector<32x1xf32>
    %cst_28 = arith.constant 1.000000e+00 : f32
    %70 = vector.broadcast %cst_28 : f32 to vector<32x1xf32>
    %71 = arith.divf %70, %69 : vector<32x1xf32>
    %cst_29 = arith.constant 2.000000e+00 : f32
    %72 = vector.broadcast %cst_29 : f32 to vector<32x1xf32>
    %73 = arith.mulf %72, %58 : vector<32x1xf32>
    %cst_30 = arith.constant 1.000000e+00 : f32
    %74 = vector.broadcast %cst_30 : f32 to vector<32x1xf32>
    %75 = arith.addf %74, %73 : vector<32x1xf32>
    %cst_31 = arith.constant 1.000000e+00 : f32
    %76 = arith.mulf %cst_31, %2 : f32
    %77 = vector.broadcast %76 : f32 to vector<32x1xf32>
    %78 = arith.addf %75, %77 : vector<32x1xf32>
    %79 = arith.mulf %78, %71 : vector<32x1xf32>
    %cst_32 = arith.constant 1.000000e+00 : f32
    %80 = vector.broadcast %cst_32 : f32 to vector<32x1xf32>
    %81 = arith.mulf %80, %57 : vector<32x1xf32>
    %cst_33 = arith.constant 1.000000e+00 : f32
    %82 = vector.broadcast %cst_33 : f32 to vector<32x1xf32>
    %83 = arith.subf %82, %81 : vector<32x1xf32>
    %84 = arith.mulf %83, %71 : vector<32x1xf32>
    %85 = arith.mulf %79, %79 : vector<32x1xf32>
    %86 = arith.mulf %85, %57 : vector<32x1xf32>
    %cst_34 = arith.constant 2.000000e+00 : f32
    %87 = vector.broadcast %cst_34 : f32 to vector<32x1xf32>
    %88 = arith.mulf %87, %79 : vector<32x1xf32>
    %89 = arith.mulf %88, %84 : vector<32x1xf32>
    %90 = arith.mulf %89, %58 : vector<32x1xf32>
    %91 = arith.addf %86, %90 : vector<32x1xf32>
    %92 = arith.mulf %84, %84 : vector<32x1xf32>
    %93 = vector.broadcast %2 : f32 to vector<32x1xf32>
    %94 = arith.mulf %92, %93 : vector<32x1xf32>
    %95 = arith.addf %91, %94 : vector<32x1xf32>
    %cst_35 = arith.constant 0.000000e+00 : f32
    %96 = vector.broadcast %cst_35 : f32 to vector<32x1xf32>
    %97 = arith.maximumf %95, %96 : vector<32x1xf32>
    %98 = math.sqrt %97 : vector<32x1xf32>
    %cst_36 = arith.constant 1.000000e-15 : f32
    %99 = vector.broadcast %cst_36 : f32 to vector<32x1xf32>
    %100 = arith.maximumf %98, %99 : vector<32x1xf32>
    %cst_37 = arith.constant 0.995999991 : f32
    %101 = vector.broadcast %cst_37 : f32 to vector<32x1xf32>
    %102 = arith.cmpf ogt, %100, %101 : vector<32x1xf32>
    %cst_38 = arith.constant 0.995999991 : f32
    %103 = vector.broadcast %cst_38 : f32 to vector<32x1xf32>
    %104 = arith.divf %103, %100 : vector<32x1xf32>
    %cst_39 = arith.constant 1.000000e+00 : f32
    %105 = vector.broadcast %cst_39 : f32 to vector<32x1xf32>
    %106 = arith.select %102, %104, %105 : vector<32x1xi1>, vector<32x1xf32>
    %cst_40 = arith.constant 0.995999991 : f32
    %107 = vector.broadcast %cst_40 : f32 to vector<32x1xf32>
    %108 = arith.minimumf %100, %107 : vector<32x1xf32>
    %cst_41 = arith.constant 1.000000e-15 : f32
    %109 = vector.broadcast %cst_41 : f32 to vector<32x1xf32>
    %110 = arith.maximumf %108, %109 : vector<32x1xf32>
    %cst_42 = arith.constant 1.000000e+00 : f32
    %111 = vector.broadcast %cst_42 : f32 to vector<32x1xf32>
    %112 = arith.mulf %111, %110 : vector<32x1xf32>
    %cst_43 = arith.constant -0.99999988 : f32
    %cst_44 = arith.constant 0.99999988 : f32
    %113 = vector.broadcast %cst_43 : f32 to vector<32x1xf32>
    %114 = arith.maximumf %113, %112 : vector<32x1xf32>
    %115 = vector.broadcast %cst_44 : f32 to vector<32x1xf32>
    %116 = arith.minimumf %115, %114 : vector<32x1xf32>
    %cst_45 = arith.constant 1.000000e+00 : f32
    %117 = vector.broadcast %cst_45 : f32 to vector<32x1xf32>
    %118 = arith.addf %117, %116 : vector<32x1xf32>
    %cst_46 = arith.constant 1.000000e+00 : f32
    %119 = vector.broadcast %cst_46 : f32 to vector<32x1xf32>
    %120 = arith.subf %119, %116 : vector<32x1xf32>
    %121 = arith.divf %118, %120 : vector<32x1xf32>
    %122 = math.log %121 : vector<32x1xf32>
    %cst_47 = arith.constant 5.000000e-01 : f32
    %123 = vector.broadcast %cst_47 : f32 to vector<32x1xf32>
    %124 = arith.mulf %123, %122 : vector<32x1xf32>
    %cst_48 = arith.constant 1.000000e+00 : f32
    %125 = vector.broadcast %cst_48 : f32 to vector<32x1xf32>
    %126 = arith.mulf %125, %110 : vector<32x1xf32>
    %127 = arith.divf %124, %126 : vector<32x1xf32>
    %128 = arith.mulf %127, %106 : vector<32x1xf32>
    %129 = arith.mulf %128, %79 : vector<32x1xf32>
    %130 = arith.mulf %129, %54 : vector<32x1xf32>
    %131 = arith.mulf %127, %106 : vector<32x1xf32>
    %132 = arith.mulf %131, %84 : vector<32x1xf32>
    %133 = vector.broadcast %130 : vector<32x1xf32> to vector<32x512xf32>
    %134 = arith.mulf %133, %11 : vector<32x512xf32>
    %135 = vector.broadcast %132 : vector<32x1xf32> to vector<32x512xf32>
    %136 = vector.broadcast %1 : vector<1x512xf32> to vector<32x512xf32>
    %137 = arith.mulf %135, %136 : vector<32x512xf32>
    %138 = arith.addf %134, %137 : vector<32x512xf32>
    %139 = arith.truncf %138 : vector<32x512xf32> to vector<32x512xbf16>
    %c0_49 = arith.constant 0 : index
    %c0_50 = arith.constant 0 : index
    %140 = vector.load %arg5[%c0_49, %c0_50] : memref<32x512xbf16, #tpu.memory_space<vmem>>, vector<32x512xbf16>
    tpu.vector_store %arg5[%c0_49, %c0_50], %139 {strides = array<i32>} : memref<32x512xbf16, #tpu.memory_space<vmem>>, vector<32x512xbf16>,
    return
  }
  func.func @transform_0(%arg0: i32) -> (i32, i32) {
    %c0_i32 = arith.constant 0 : i32
    %c0_i32_0 = arith.constant 0 : i32
    return %arg0, %c0_i32 : i32, i32
  }
  func.func @transform_1(%arg0: i32) -> (i32, i32) {
    %c0_i32 = arith.constant 0 : i32
    %c0_i32_0 = arith.constant 0 : i32
    %c0_i32_1 = arith.constant 0 : i32
    return %c0_i32, %c0_i32_0 : i32, i32
  }
  func.func @transform_2(%arg0: i32) -> (i32, i32) {
    %c0_i32 = arith.constant 0 : i32
    %c0_i32_0 = arith.constant 0 : i32
    %c0_i32_1 = arith.constant 0 : i32
    return %c0_i32, %c0_i32_0 : i32, i32
  }
  func.func @transform_3(%arg0: i32) -> i32 {
    %c0_i32 = arith.constant 0 : i32
    %c0_i32_0 = arith.constant 0 : i32
    return %c0_i32 : i32
  }
  func.func @transform_4(%arg0: i32) -> (i32, i32) {
    %c0_i32 = arith.constant 0 : i32
    %c0_i32_0 = arith.constant 0 : i32
    return %arg0, %c0_i32 : i32, i32
  }
}

</mosaic_0001>

<llo_original>
// kernel: tpu_custom_call.1
$region0: #{tpu_custom_call.1}
  #allocation0 [shape = 'u32[]', space=smem, size = 0x4, offset = 0x4, fixed_abs, tag = 'smem constant byte address 0x4 - core index']
  #allocation1 [shape = 'u32[144,128]{1,0:T(1,128)}', space=vmem, size = 0x12000, scoped, tag = 'internal scratch']
  #allocation2 [shape = 'f32[1]{0:T(128)S(6)}', space=smem, size = 0x200, scoped, tag = 'scoped memory for tpu_custom_call.1']
  %s0 = inlined_call_operand.hbm [shape: f32[64,64], index: 0, kind: input, shape index: {}]
  %s1 = inlined_call_operand.hbm [shape: bf16[64,512], index: 1, kind: input, shape index: {}]
  %s2 = inlined_call_operand.vmem [shape: f32[1,512], index: 2, kind: input, shape index: {}]
  %s3 = inlined_call_operand.<no memory space> [shape: f32[1], index: 3, kind: input, shape index: {}]
  %s4 = inlined_call_operand.hbm [shape: bf16[64,512], index: 4, kind: output, shape index: {}]
  %s5 = sld [smem:[#allocation0]]
  $region57: #{tpu_custom_call.1} parent=0
    _
  %s7 = ssub.s32 1, %s5
  %s8 = scalar_select 0, %s7, %s5
  %9 = sst [smem:[#allocation2]] %s3
  $region1: #{tpu_custom_call.1} parent=0
    #allocation3 [shape = 'u8[32768]{0}', space=vmem, size = 0x8000, scoped, tag = 'input window, operand 0']
    #allocation4 [shape = 's32[2]{0}', space=sflag, size = 0x8, scoped, tag = 'scoped memory for tpu_custom_call.1']
    #allocation5 [shape = 's32[2]{0}', space=sflag, size = 0x8, scoped, tag = 'scoped memory for tpu_custom_call.1']
    #allocation6 [shape = 'u8[65536]{0}', space=vmem, size = 0x10000, scoped, tag = 'input window, operand 1, single buffered']
    #allocation7 [shape = 's32[1]{0}', space=sflag, size = 0x4, scoped, tag = 'scoped memory for tpu_custom_call.1']
    #allocation8 [shape = 'u8[65536]{0}', space=vmem, size = 0x10000, scoped, tag = 'output window, operand 0']
    %10 = vsyncpa [#allocation4], 0
    %s11 = scalar_lea.sflag [#allocation4], 1
    %12 = vsyncpa %s11, 0
    %13 = vsyncpa [#allocation7], 0
    %14 = vsyncpa [#allocation5], 0
    %s15 = scalar_lea.sflag [#allocation5], 1
    %16 = vsyncpa %s15, 0
    loop: start=0, step=1, limit=4
    $region2: #{tpu_custom_call.1} parent=1 // loop_pre_header
      _
    $region3: #{tpu_custom_call.1} parent=1 // loop_header
      %s18 = sphi 0, %s22
      %p19 = scmp.ge.s32.totalorder %s18, 4
      %s28 = sphi 0, %s30
      %s31 = sphi 0, %s28
      %s32 = sphi 0, %s31
      %s48 = sphi 0, %s32
      %s52 = sphi 0, %s52
      %s54 = sphi 0, %s52
      %s55 = sphi 0, %s54
      %s69 = sphi 0, %s55
      %s73 = sphi 0, %s73
      %s75 = sphi 0, %s73
      %s76 = sphi 0, %s75
      %s90 = sphi 0, %s76
      %s94 = sphi 0, %s94
      %s96 = sphi 0, %s94
      %s97 = sphi 0, %s96
      %s111 = sphi 0, %s97
      %s117 = sphi 0, %s119
      %s120 = sphi 0, %s117
      %s121 = sphi 0, %s120
      %s137 = sphi 0, %s121
    $region4: #{tpu_custom_call.1} parent=1 // loop_header_branch
      %21 = sbr.rel (%p19) target = $region8
    $region5: #{tpu_custom_call.1} parent=1 // loop_body
      %s23 = ssub.s32 %s18, 1
      %s24 = ssub.s32 %s18, 2
      %s25 = sadd.s32 %s18, 1
      %s26 = ssub.s32 %s18, %s25
      %p27 = scmp.eq.s32.totalorder %s26, 0
      %s29 = sadd.s32 %s28, 1
      %s30 = scalar_select %p27, %s28, %s29
      %p33 = pneg %p27
      %p34 = scmp.eq.s32.totalorder %s18, 1
      %p35 = por %p33, %p34
      %p36 = scmp.ne.s32.totalorder %s28, %s31
      %p37 = scmp.eq.s32.totalorder %s18, 0
      %p38 = por %p36, %p37
      %p39 = scmp.ne.s32.totalorder %s28, %s31
      %p40 = scmp.eq.s32.totalorder %s23, 1
      %p41 = por %p39, %p40
      %p42 = scmp.ne.s32.totalorder %s31, %s32
      %p43 = scmp.eq.s32.totalorder %s23, 0
      %p44 = por %p42, %p43
      %p45 = scmp.ne.s32.totalorder %s31, %s32
      %p46 = scmp.eq.s32.totalorder %s24, 1
      %p47 = por %p45, %p46
      %p49 = scmp.ne.s32.totalorder %s32, %s48
      %p50 = scmp.eq.s32.totalorder %s24, 0
      %p51 = por %p49, %p50
      %s53 = sadd.s32 %s52, 1
      %p56 = scmp.eq.s32.totalorder %s18, 1
      %p57 = scmp.ne.s32.totalorder %s52, %s54
      %p58 = scmp.eq.s32.totalorder %s18, 0
      %p59 = por %p57, %p58
      %p60 = scmp.ne.s32.totalorder %s52, %s54
      %p61 = scmp.eq.s32.totalorder %s23, 1
      %p62 = por %p60, %p61
      %p63 = scmp.ne.s32.totalorder %s54, %s55
      %p64 = scmp.eq.s32.totalorder %s23, 0
      %p65 = por %p63, %p64
      %p66 = scmp.ne.s32.totalorder %s54, %s55
      %p67 = scmp.eq.s32.totalorder %s24, 1
      %p68 = por %p66, %p67
      %p70 = scmp.ne.s32.totalorder %s55, %s69
      %p71 = scmp.eq.s32.totalorder %s24, 0
      %p72 = por %p70, %p71
      %s74 = sadd.s32 %s73, 1
      %p77 = scmp.eq.s32.totalorder %s18, 1
      %p78 = scmp.ne.s32.totalorder %s73, %s75
      %p79 = scmp.eq.s32.totalorder %s18, 0
      %p80 = por %p78, %p79
      %p81 = scmp.ne.s32.totalorder %s73, %s75
      %p82 = scmp.eq.s32.totalorder %s23, 1
      %p83 = por %p81, %p82
      %p84 = scmp.ne.s32.totalorder %s75, %s76
      %p85 = scmp.eq.s32.totalorder %s23, 0
      %p86 = por %p84, %p85
      %p87 = scmp.ne.s32.totalorder %s75, %s76
      %p88 = scmp.eq.s32.totalorder %s24, 1
      %p89 = por %p87, %p88
      %p91 = scmp.ne.s32.totalorder %s76, %s90
      %p92 = scmp.eq.s32.totalorder %s24, 0
      %p93 = por %p91, %p92
      %s95 = sadd.s32 %s94, 1
      %p98 = scmp.eq.s32.totalorder %s18, 1
      %p99 = scmp.ne.s32.totalorder %s94, %s96
      %p100 = scmp.eq.s32.totalorder %s18, 0
      %p101 = por %p99, %p100
      %p102 = scmp.ne.s32.totalorder %s94, %s96
      %p103 = scmp.eq.s32.totalorder %s23, 1
      %p104 = por %p102, %p103
      %p105 = scmp.ne.s32.totalorder %s96, %s97
      %p106 = scmp.eq.s32.totalorder %s23, 0
      %p107 = por %p105, %p106
      %p108 = scmp.ne.s32.totalorder %s96, %s97
      %p109 = scmp.eq.s32.totalorder %s24, 1
      %p110 = por %p108, %p109
      %p112 = scmp.ne.s32.totalorder %s97, %s111
      %p113 = scmp.eq.s32.totalorder %s24, 0
      %p114 = por %p112, %p113
      %s115 = ssub.s32 %s18, %s25
      %p116 = scmp.eq.s32.totalorder %s115, 0
      %s118 = sadd.s32 %s117, 1
      %s119 = scalar_select %p116, %s117, %s118
      %p122 = pneg %p116
      %p123 = scmp.eq.s32.totalorder %s18, 1
      %p124 = por %p122, %p123
      %p125 = scmp.ne.s32.totalorder %s117, %s120
      %p126 = scmp.eq.s32.totalorder %s18, 0
      %p127 = por %p125, %p126
      %p128 = scmp.ne.s32.totalorder %s117, %s120
      %p129 = scmp.eq.s32.totalorder %s23, 1
      %p130 = por %p128, %p129
      %p131 = scmp.ne.s32.totalorder %s120, %s121
      %p132 = scmp.eq.s32.totalorder %s23, 0
      %p133 = por %p131, %p132
      %p134 = scmp.ne.s32.totalorder %s120, %s121
      %p135 = scmp.eq.s32.totalorder %s24, 1
      %p136 = por %p134, %p135
      %p138 = scmp.ne.s32.totalorder %s121, %s137
      %p139 = scmp.eq.s32.totalorder %s24, 0
      %p140 = por %p138, %p139
      %p141 = scmp.le.s32.totalorder 1, %s18
      %p142 = scmp.lt.s32.totalorder %s18, 3
      %p143 = pnand %p141, %p142
      %p144 = pneg %p143
      // Predicated region
      $region9: #{tpu_custom_call.1} parent=5 // pred_check
        _
      $region10: #{tpu_custom_call.1} parent=5 // pred_check_branch
        %146 = sbr.rel (%p143) target = $region12
      $region11: #{tpu_custom_call.1} parent=5 // pred_region
        %s147 = ssub.s32 %s18, 1
        // Predicated region
        $region13: #{tpu_custom_call.1} parent=11 // pred_check
          %p148 = pneg %p65
        $region14: #{tpu_custom_call.1} parent=11 // pred_check_branch
          %150 = sbr.rel (%p148) target = $region16
        $region15: #{tpu_custom_call.1} parent=11 // pred_region
          %s152 = ssub.s32 2048, 2048
          %153 = vsyncadd [#allocation7], %s152
          %s154 = sshll.u32 [#allocation6], 4
          %s155 = int_to_ptr.vmem [resolvable:$true] %s154
          %160 = dma.hbm_to_vmem [thread:$0]  %s1, 2048, %s155, [#allocation7], 256, 256, 16
        $region16: #{tpu_custom_call.1} parent=11 // pred_fallthru
          _
        // Predicated region
        $region17: #{tpu_custom_call.1} parent=11 // pred_check
          %p161 = pneg %p86
        $region18: #{tpu_custom_call.1} parent=11 // pred_check_branch
          %163 = sbr.rel (%p161) target = $region20
        $region19: #{tpu_custom_call.1} parent=11 // pred_region
          _
        $region20: #{tpu_custom_call.1} parent=11 // pred_fallthru
          _
        // Predicated region
        $region21: #{tpu_custom_call.1} parent=11 // pred_check
          %p164 = pneg %p107
        $region22: #{tpu_custom_call.1} parent=11 // pred_check_branch
          %166 = sbr.rel (%p164) target = $region24
        $region23: #{tpu_custom_call.1} parent=11 // pred_region
          _
        $region24: #{tpu_custom_call.1} parent=11 // pred_fallthru
          _
      $region12: #{tpu_custom_call.1} parent=5 // pred_fallthru
        _
      %p167 = scmp.lt.s32.totalorder %s18, 2
      // Predicated region
      $region25: #{tpu_custom_call.1} parent=5 // pred_check
        %p168 = pneg %p167
      $region26: #{tpu_custom_call.1} parent=5 // pred_check_branch
        %170 = sbr.rel (%p168) target = $region28
      $region27: #{tpu_custom_call.1} parent=5 // pred_region
        // Predicated region
        $region29: #{tpu_custom_call.1} parent=27 // pred_check
          %p171 = pneg %p38
        $region30: #{tpu_custom_call.1} parent=27 // pred_check_branch
          %173 = sbr.rel (%p171) target = $region32
        $region31: #{tpu_custom_call.1} parent=27 // pred_region
          %s174 = sand.u32 %s28, 1
          %s175 = scalar_lea.sflag [#allocation4], %s174
          %s176 = sand.u32 %s28, 1
          %s177 = smul.addr %s176, 32
          %s178 = scalar_lea.vmem [#allocation3], %s177
          %s179 = smul.u32 4, %s18
          %s181 = ssub.s32 512, 512
          %182 = vsyncadd %s175, %s181
          %s183 = smul.addr %s179, 128
          %s184 = scalar_lea.hbm %s0, %s183
          %s185 = sshll.u32 %s178, 4
          %s186 = int_to_ptr.vmem [resolvable:$true] %s185
          %191 = dma.hbm_to_vmem [thread:$0]  %s184, 512, %s186, %s175, 128, 128, 8
        $region32: #{tpu_custom_call.1} parent=27 // pred_fallthru
          _
      $region28: #{tpu_custom_call.1} parent=5 // pred_fallthru
        _
      %p192 = scmp.le.s32.totalorder 1, %s18
      %p193 = scmp.lt.s32.totalorder %s18, 3
      %p194 = pnand %p192, %p193
      %p195 = pneg %p194
      // Predicated region
      $region33: #{tpu_custom_call.1} parent=5 // pred_check
        _
      $region34: #{tpu_custom_call.1} parent=5 // pred_check_branch
        %197 = sbr.rel (%p194) target = $region36
      $region35: #{tpu_custom_call.1} parent=5 // pred_region
        %s198 = ssub.s32 %s18, 1
        %s199 = sand.u32 %s31, 1
        %s200 = scalar_lea.sflag [#allocation4], %s199
        %s201 = sand.u32 %s31, 1
        %s202 = smul.addr %s201, 32
        %s203 = scalar_lea.vmem [#allocation3], %s202
        // Predicated region
        $region37: #{tpu_custom_call.1} parent=35 // pred_check
          %p204 = pneg %p44
        $region38: #{tpu_custom_call.1} parent=35 // pred_check_branch
          %206 = sbr.rel (%p204) target = $region40
        $region39: #{tpu_custom_call.1} parent=35 // pred_region
          %207 = dma.done %s200, 512
        $region40: #{tpu_custom_call.1} parent=35 // pred_fallthru
          _
        // Predicated region
        $region41: #{tpu_custom_call.1} parent=35 // pred_check
          %p208 = pneg %p65
        $region42: #{tpu_custom_call.1} parent=35 // pred_check_branch
          %210 = sbr.rel (%p208) target = $region44
        $region43: #{tpu_custom_call.1} parent=35 // pred_region
          %211 = dma.done [#allocation7], 2048
        $region44: #{tpu_custom_call.1} parent=35 // pred_fallthru
          _
        %s212 = sand.u32 %s31, 1
        %s213 = scalar_lea.sflag [#allocation4], %s212
        %s214 = sand.u32 %s31, 1
        %s215 = smul.addr %s214, 32
        %s216 = scalar_lea.vmem [#allocation3], %s215
        %p217 = pneg %p44
        %p218 = pneg %p41
        %p219 = pneg %p65
        %p220 = pneg %p62
        %p221 = pneg %p86
        %p222 = pneg %p83
        %p223 = pneg %p107
        %p224 = pneg %p104
        %p225 = pneg %p133
        %p226 = pneg %p130
        %s227 = sand.u32 %s120, 1
        %s228 = scalar_lea.sflag [#allocation5], %s227
        %s229 = sand.u32 %s120, 1
        %s230 = smul.addr %s229, 64
        %s231 = scalar_lea.vmem [#allocation8], %s230
        %s232 = smul.u32 4, %s23
        %s233 = smul.u32 4, %s23
        %v235 = vld [vmem:[%s203] sm:$0xff]
        %v236 = vld [vmem:[%s203 + $0x8] sm:$0xff]
        %v237 = vld [vmem:[%s203 + $0x10] sm:$0xff]
        %v238 = vld [vmem:[%s203 + $0x18] sm:$0xff]
        %v239 = vld [vmem:[%s2] sm:$0xf]
        %s240 = sld [smem:[#allocation2]]
        %v241 = vmul.f32 %v235, %v235
        %v242 = vmul.f32 %v236, %v236
        %v243 = vmul.f32 %v237, %v237
        %v244 = vmul.f32 %v238, %v238
        %vm245 = vcmask 523264
        %v246 = vsel %vm245, %v241, 0.0
        %247 = vadd.xlane.f32.xlu0 %v246
        %v248 = vpop.xlane.xlu0 %247
        %v249 = vsel %vm245, %v242, 0.0
        %250 = vadd.xlane.f32.xlu0 %v249
        %v251 = vpop.xlane.xlu0 %250
        %v252 = vsel %vm245, %v243, 0.0
        %253 = vadd.xlane.f32.xlu0 %v252
        %v254 = vpop.xlane.xlu0 %253
        %v255 = vsel %vm245, %v244, 0.0
        %256 = vadd.xlane.f32.xlu0 %v255
        %v257 = vpop.xlane.xlu0 %256
        %v258 = vrsqrt.pop %v248
        %v259 = vmul.f32 %v248, %v258
        %vm260 = vcmp.eq.f32.partialorder %v248, inf
        %v261 = vsel %vm260, %v248, %v259
        %vm262 = vcmp.eq.f32.partialorder %v248, 0.0
        %v263 = vand.u32 %v248, 2147483648
        %v264 = vsel %vm262, %v263, %v261
        %v265 = vrsqrt.pop %v251
        %v266 = vmul.f32 %v251, %v265
        %vm267 = vcmp.eq.f32.partialorder %v251, inf
        %v268 = vsel %vm267, %v251, %v266
        %vm269 = vcmp.eq.f32.partialorder %v251, 0.0
        %v270 = vand.u32 %v251, 2147483648
        %v271 = vsel %vm269, %v270, %v268
        %v272 = vrsqrt.pop %v254
        %v273 = vmul.f32 %v254, %v272
        %vm274 = vcmp.eq.f32.partialorder %v254, inf
        %v275 = vsel %vm274, %v254, %v273
        %vm276 = vcmp.eq.f32.partialorder %v254, 0.0
        %v277 = vand.u32 %v254, 2147483648
        %v278 = vsel %vm276, %v277, %v275
        %v279 = vrsqrt.pop %v257
        %v280 = vmul.f32 %v257, %v279
        %vm281 = vcmp.eq.f32.partialorder %v257, inf
        %v282 = vsel %vm281, %v257, %v280
        %vm283 = vcmp.eq.f32.partialorder %v257, 0.0
        %v284 = vand.u32 %v257, 2147483648
        %v285 = vsel %vm283, %v284, %v282
        %v286 = vmax.f32 %v264, 1e-15
        %v287 = vmax.f32 %v271, 1e-15
        %v288 = vmax.f32 %v278, 1e-15
        %v289 = vmax.f32 %v285, 1e-15
        %v290 = vpack.c.bf16 %v236, %v235
        %v291 = vpack.c.bf16 %v238, %v237
        %v292 = vld [vmem:[#allocation6] sm:$0xff]
        %v293 = vld [vmem:[#allocation6 + $0x8] sm:$0xff]
        %v294 = vld [vmem:[#allocation6 + $0x10] sm:$0xff]
        %v295 = vld [vmem:[#allocation6 + $0x18] sm:$0xff]
        %v296 = vld [vmem:[#allocation6 + $0x20] sm:$0xff]
        %v297 = vld [vmem:[#allocation6 + $0x28] sm:$0xff]
        %v298 = vld [vmem:[#allocation6 + $0x30] sm:$0xff]
        %v299 = vld [vmem:[#allocation6 + $0x38] sm:$0xff]
        %v300 = vld [vmem:[#allocation6 + $0x40] sm:$0xff]
        %v301 = vld [vmem:[#allocation6 + $0x48] sm:$0xff]
        %v302 = vld [vmem:[#allocation6 + $0x50] sm:$0xff]
        %v303 = vld [vmem:[#allocation6 + $0x58] sm:$0xff]
        %v304 = vld [vmem:[#allocation6 + $0x60] sm:$0xff]
        %v305 = vld [vmem:[#allocation6 + $0x68] sm:$0xff]
        %v306 = vld [vmem:[#allocation6 + $0x70] sm:$0xff]
        %v307 = vld [vmem:[#allocation6 + $0x78] sm:$0xff]
        %v324 = vunpack.c.l.b16 %v292
        %v325 = vunpack.c.h.b16 %v292
        %v326 = vunpack.c.l.b16 %v293
        %v327 = vunpack.c.h.b16 %v293
        %v328 = vunpack.c.l.b16 %v294
        %v329 = vunpack.c.h.b16 %v294
        %v330 = vunpack.c.l.b16 %v295
        %v331 = vunpack.c.h.b16 %v295
        %v332 = vunpack.c.l.b16 %v296
        %v333 = vunpack.c.h.b16 %v296
        %v334 = vunpack.c.l.b16 %v297
        %v335 = vunpack.c.h.b16 %v297
        %v336 = vunpack.c.l.b16 %v298
        %v337 = vunpack.c.h.b16 %v298
        %v338 = vunpack.c.l.b16 %v299
        %v339 = vunpack.c.h.b16 %v299
        %v340 = vunpack.c.l.b16 %v300
        %v341 = vunpack.c.h.b16 %v300
        %v342 = vunpack.c.l.b16 %v301
        %v343 = vunpack.c.h.b16 %v301
        %v344 = vunpack.c.l.b16 %v302
        %v345 = vunpack.c.h.b16 %v302
        %v346 = vunpack.c.l.b16 %v303
        %v347 = vunpack.c.h.b16 %v303
        %v348 = vunpack.c.l.b16 %v304
        %v349 = vunpack.c.h.b16 %v304
        %v350 = vunpack.c.l.b16 %v305
        %v351 = vunpack.c.h.b16 %v305
        %v352 = vunpack.c.l.b16 %v306
        %v353 = vunpack.c.h.b16 %v306
        %v354 = vunpack.c.l.b16 %v307
        %v355 = vunpack.c.h.b16 %v307
        %v356 = vpack.c.b16 %v328, %v324
        %v357 = vpack.c.b16 %v329, %v325
        %v358 = vpack.c.b16 %v330, %v326
        %v359 = vpack.c.b16 %v331, %v327
        %v360 = vpack.c.b16 %v336, %v332
        %v361 = vpack.c.b16 %v337, %v333
        %v362 = vpack.c.b16 %v338, %v334
        %v363 = vpack.c.b16 %v339, %v335
        %v364 = vpack.c.b16 %v344, %v340
        %v365 = vpack.c.b16 %v345, %v341
        %v366 = vpack.c.b16 %v346, %v342
        %v367 = vpack.c.b16 %v347, %v343
        %v368 = vpack.c.b16 %v352, %v348
        %v369 = vpack.c.b16 %v353, %v349
        %v370 = vpack.c.b16 %v354, %v350
        %v371 = vpack.c.b16 %v355, %v351
        %v389 = vsel %vm245, %v290, 0
        %v392 = vsel %vm245, %v291, 0
        %394 = vmatprep.subr.bf16.mxu0 %v357
        %395 = vmatpush1.bf16.msra.mxu0 %v356
        %396 = vmatprep.subr.bf16.mxu0 %v361
        %397 = vmatpush1.bf16.msra.mxu0 %v360
        %398 = vmatprep.subr.bf16.mxu0 %v365
        %399 = vmatpush1.bf16.msra.mxu0 %v364
        %400 = vmatprep.subr.bf16.mxu0 %v369
        %401 = vmatpush1.bf16.msra.mxu0 %v368
        %402 = vmatprep.subr.bf16.mxu0 0
        %403 = vmatpush1.bf16.msra.mxu0 0
        %404 = vmatprep.subr.bf16.mxu0 0
        %405 = vmatpush1.bf16.msra.mxu0 0
        %406 = vmatprep.subr.bf16.mxu0 0
        %407 = vmatpush1.bf16.msra.mxu0 0
        %408 = vmatprep.subr.bf16.mxu0 0
        %409 = vmatpush1.bf16.msra.mxu0 0
        %410 = vmatprep.subr.bf16.mxu0 0
        %411 = vmatpush1.bf16.msra.mxu0 0
        %412 = vmatprep.subr.bf16.mxu0 0
        %413 = vmatpush1.bf16.msra.mxu0 0
        %414 = vmatprep.subr.bf16.mxu0 0
        %415 = vmatpush1.bf16.msra.mxu0 0
        %416 = vmatprep.subr.bf16.mxu0 0
        %417 = vmatpush1.bf16.msra.mxu0 0
        %418 = vmatprep.subr.bf16.mxu0 0
        %419 = vmatpush1.bf16.msra.mxu0 0
        %420 = vmatprep.subr.bf16.mxu0 0
        %421 = vmatpush1.bf16.msra.mxu0 0
        %422 = vmatprep.subr.bf16.mxu0 0
        %423 = vmatpush1.bf16.msra.mxu0 0
        %424 = vmatprep.subr.bf16.mxu0 0
        %425 = vmatpush1.bf16.msra.mxu0 0
        %426 = vmatprep.mubr.bf16.mxu0 0
        %427 = vmatmul.mubr.bf16.gmra.mrb[0].mxu0 %v389
        %v428 = vpop.f32.mrb[0].mxu0
        %v429 = vadd.f32 0.0, %v428
        %v430 = vpop.f32.mrb[0].mxu0
        %v431 = vadd.f32 0.0, %v430
        %v432 = vpop.f32.mrb[0].mxu0
        %v433 = vadd.f32 0.0, %v432
        %v434 = vpop.f32.mrb[0].mxu0
        %v435 = vadd.f32 0.0, %v434
        %436 = vmatprep.mubr.bf16.mxu0 0
        %437 = vmatmul.mubr.bf16.gmra.mrb[0].mxu0 %v392
        %v438 = vpop.f32.mrb[0].mxu0
        %v439 = vadd.f32 0.0, %v438
        %v440 = vpop.f32.mrb[0].mxu0
        %v441 = vadd.f32 0.0, %v440
        %v442 = vpop.f32.mrb[0].mxu0
        %v443 = vadd.f32 0.0, %v442
        %v444 = vpop.f32.mrb[0].mxu0
        %v445 = vadd.f32 0.0, %v444
        %446 = vdwg.mxu0
        %447 = vmatprep.subr.bf16.mxu0 %v359
        %448 = vmatpush1.bf16.msra.mxu0 %v358
        %449 = vmatprep.subr.bf16.mxu0 %v363
        %450 = vmatpush1.bf16.msra.mxu0 %v362
        %451 = vmatprep.subr.bf16.mxu0 %v367
        %452 = vmatpush1.bf16.msra.mxu0 %v366
        %453 = vmatprep.subr.bf16.mxu0 %v371
        %454 = vmatpush1.bf16.msra.mxu0 %v370
        %455 = vmatprep.subr.bf16.mxu0 0
        %456 = vmatpush1.bf16.msra.mxu0 0
        %457 = vmatprep.subr.bf16.mxu0 0
        %458 = vmatpush1.bf16.msra.mxu0 0
        %459 = vmatprep.subr.bf16.mxu0 0
        %460 = vmatpush1.bf16.msra.mxu0 0
        %461 = vmatprep.subr.bf16.mxu0 0
        %462 = vmatpush1.bf16.msra.mxu0 0
        %463 = vmatprep.subr.bf16.mxu0 0
        %464 = vmatpush1.bf16.msra.mxu0 0
        %465 = vmatprep.subr.bf16.mxu0 0
        %466 = vmatpush1.bf16.msra.mxu0 0
        %467 = vmatprep.subr.bf16.mxu0 0
        %468 = vmatpush1.bf16.msra.mxu0 0
        %469 = vmatprep.subr.bf16.mxu0 0
        %470 = vmatpush1.bf16.msra.mxu0 0
        %471 = vmatprep.subr.bf16.mxu0 0
        %472 = vmatpush1.bf16.msra.mxu0 0
        %473 = vmatprep.subr.bf16.mxu0 0
        %474 = vmatpush1.bf16.msra.mxu0 0
        %475 = vmatprep.subr.bf16.mxu0 0
        %476 = vmatpush1.bf16.msra.mxu0 0
        %477 = vmatprep.subr.bf16.mxu0 0
        %478 = vmatpush1.bf16.msra.mxu0 0
        %479 = vmatprep.mubr.bf16.mxu0 0
        %480 = vmatmul.mubr.bf16.gmra.mrb[0].mxu0 %v389
        %v481 = vpop.f32.mrb[0].mxu0
        %v482 = vadd.f32 0.0, %v481
        %v483 = vpop.f32.mrb[0].mxu0
        %v484 = vadd.f32 0.0, %v483
        %v485 = vpop.f32.mrb[0].mxu0
        %v486 = vadd.f32 0.0, %v485
        %v487 = vpop.f32.mrb[0].mxu0
        %v488 = vadd.f32 0.0, %v487
        %489 = vmatprep.mubr.bf16.mxu0 0
        %490 = vmatmul.mubr.bf16.gmra.mrb[0].mxu0 %v392
        %v491 = vpop.f32.mrb[0].mxu0
        %v492 = vadd.f32 0.0, %v491
        %v493 = vpop.f32.mrb[0].mxu0
        %v494 = vadd.f32 0.0, %v493
        %v495 = vpop.f32.mrb[0].mxu0
        %v496 = vadd.f32 0.0, %v495
        %v497 = vpop.f32.mrb[0].mxu0
        %v498 = vadd.f32 0.0, %v497
        %499 = vdwg.mxu0
        %v500 = vmul.f32 %v429, %v429
        %v501 = vmul.f32 %v431, %v431
        %v502 = vmul.f32 %v482, %v482
        %v503 = vmul.f32 %v484, %v484
        %v504 = vmul.f32 %v433, %v433
        %v505 = vmul.f32 %v435, %v435
        %v506 = vmul.f32 %v486, %v486
        %v507 = vmul.f32 %v488, %v488
        %v508 = vmul.f32 %v439, %v439
        %v509 = vmul.f32 %v441, %v441
        %v510 = vmul.f32 %v492, %v492
        %v511 = vmul.f32 %v494, %v494
        %v512 = vmul.f32 %v443, %v443
        %v513 = vmul.f32 %v445, %v445
        %v514 = vmul.f32 %v496, %v496
        %v515 = vmul.f32 %v498, %v498
        %v516 = vadd.f32 %v500, %v501
        %v517 = vadd.f32 %v516, %v502
        %v518 = vadd.f32 %v517, %v503
        %519 = vadd.xlane.f32.xlu0 %v518
        %v520 = vpop.xlane.xlu0 %519
        %v521 = vadd.f32 %v504, %v505
        %v522 = vadd.f32 %v521, %v506
        %v523 = vadd.f32 %v522, %v507
        %524 = vadd.xlane.f32.xlu0 %v523
        %v525 = vpop.xlane.xlu0 %524
        %v526 = vadd.f32 %v508, %v509
        %v527 = vadd.f32 %v526, %v510
        %v528 = vadd.f32 %v527, %v511
        %529 = vadd.xlane.f32.xlu0 %v528
        %v530 = vpop.xlane.xlu0 %529
        %v531 = vadd.f32 %v512, %v513
        %v532 = vadd.f32 %v531, %v514
        %v533 = vadd.f32 %v532, %v515
        %534 = vadd.xlane.f32.xlu0 %v533
        %v535 = vpop.xlane.xlu0 %534
        %v537 = vlaneseq
        %v538 = vshrl.u32 %v537, 7
        %v539 = vsub.s32 0, %v538
        %v540 = vrot.slane %v239, %v539
        %v541 = vlaneseq
        %v542 = vshrl.u32 %v541, 7
        %v543 = vsub.s32 1, %v542
        %v544 = vrot.slane %v239, %v543
        %v545 = vlaneseq
        %v546 = vshrl.u32 %v545, 7
        %v547 = vsub.s32 2, %v546
        %v548 = vrot.slane %v239, %v547
        %v549 = vlaneseq
        %v550 = vshrl.u32 %v549, 7
        %v551 = vsub.s32 3, %v550
        %v552 = vrot.slane %v239, %v551
        %v557 = vmul.f32 %v429, %v540
        %v558 = vmul.f32 %v431, %v544
        %v559 = vmul.f32 %v482, %v548
        %v560 = vmul.f32 %v484, %v552
        %v561 = vmul.f32 %v433, %v540
        %v562 = vmul.f32 %v435, %v544
        %v563 = vmul.f32 %v486, %v548
        %v564 = vmul.f32 %v488, %v552
        %v565 = vmul.f32 %v439, %v540
        %v566 = vmul.f32 %v441, %v544
        %v567 = vmul.f32 %v492, %v548
        %v568 = vmul.f32 %v494, %v552
        %v569 = vmul.f32 %v443, %v540
        %v570 = vmul.f32 %v445, %v544
        %v571 = vmul.f32 %v496, %v548
        %v572 = vmul.f32 %v498, %v552
        %v573 = vadd.f32 %v557, %v558
        %v574 = vadd.f32 %v573, %v559
        %v575 = vadd.f32 %v574, %v560
        %576 = vadd.xlane.f32.xlu0 %v575
        %v577 = vpop.xlane.xlu0 %576
        %v578 = vadd.f32 %v561, %v562
        %v579 = vadd.f32 %v578, %v563
        %v580 = vadd.f32 %v579, %v564
        %581 = vadd.xlane.f32.xlu0 %v580
        %v582 = vpop.xlane.xlu0 %581
        %v583 = vadd.f32 %v565, %v566
        %v584 = vadd.f32 %v583, %v567
        %v585 = vadd.f32 %v584, %v568
        %586 = vadd.xlane.f32.xlu0 %v585
        %v587 = vpop.xlane.xlu0 %586
        %v588 = vadd.f32 %v569, %v570
        %v589 = vadd.f32 %v588, %v571
        %v590 = vadd.f32 %v589, %v572
        %591 = vadd.xlane.f32.xlu0 %v590
        %v592 = vpop.xlane.xlu0 %591
        %v593 = vrsqrt.pop %v520
        %v594 = vmul.f32 %v520, %v593
        %vm595 = vcmp.eq.f32.partialorder %v520, inf
        %v596 = vsel %vm595, %v520, %v594
        %vm597 = vcmp.eq.f32.partialorder %v520, 0.0
        %v598 = vand.u32 %v520, 2147483648
        %v599 = vsel %vm597, %v598, %v596
        %v600 = vrsqrt.pop %v525
        %v601 = vmul.f32 %v525, %v600
        %vm602 = vcmp.eq.f32.partialorder %v525, inf
        %v603 = vsel %vm602, %v525, %v601
        %vm604 = vcmp.eq.f32.partialorder %v525, 0.0
        %v605 = vand.u32 %v525, 2147483648
        %v606 = vsel %vm604, %v605, %v603
        %v607 = vrsqrt.pop %v530
        %v608 = vmul.f32 %v530, %v607
        %vm609 = vcmp.eq.f32.partialorder %v530, inf
        %v610 = vsel %vm609, %v530, %v608
        %vm611 = vcmp.eq.f32.partialorder %v530, 0.0
        %v612 = vand.u32 %v530, 2147483648
        %v613 = vsel %vm611, %v612, %v610
        %v614 = vrsqrt.pop %v535
        %v615 = vmul.f32 %v535, %v614
        %vm616 = vcmp.eq.f32.partialorder %v535, inf
        %v617 = vsel %vm616, %v535, %v615
        %vm618 = vcmp.eq.f32.partialorder %v535, 0.0
        %v619 = vand.u32 %v535, 2147483648
        %v620 = vsel %vm618, %v619, %v617
        %v621 = vmax.f32 %v599, 1e-15
        %v622 = vmax.f32 %v606, 1e-15
        %v623 = vmax.f32 %v613, 1e-15
        %v624 = vmax.f32 %v620, 1e-15
        %v625 = vrcp.pop %v286
        %v626 = vmul.f32 %v621, %v625
        %v627 = vrcp.pop %v287
        %v628 = vmul.f32 %v622, %v627
        %v629 = vrcp.pop %v288
        %v630 = vmul.f32 %v623, %v629
        %v631 = vrcp.pop %v289
        %v632 = vmul.f32 %v624, %v631
        %v633 = vmax.f32 %v286, -0.9999999
        %v634 = vmax.f32 %v287, -0.9999999
        %v635 = vmax.f32 %v288, -0.9999999
        %v636 = vmax.f32 %v289, -0.9999999
        %v637 = vmin.f32 %v633, 0.9999999
        %v638 = vmin.f32 %v634, 0.9999999
        %v639 = vmin.f32 %v635, 0.9999999
        %v640 = vmin.f32 %v636, 0.9999999
        %v641 = vadd.f32 %v637, 1.0
        %v642 = vadd.f32 %v638, 1.0
        %v643 = vadd.f32 %v639, 1.0
        %v644 = vadd.f32 %v640, 1.0
        %v645 = vsub.f32 1.0, %v637
        %v646 = vsub.f32 1.0, %v638
        %v647 = vsub.f32 1.0, %v639
        %v648 = vsub.f32 1.0, %v640
        %v649 = vrcp.pop %v645
        %v650 = vmul.f32 %v641, %v649
        %v651 = vrcp.pop %v646
        %v652 = vmul.f32 %v642, %v651
        %v653 = vrcp.pop %v647
        %v654 = vmul.f32 %v643, %v653
        %v655 = vrcp.pop %v648
        %v656 = vmul.f32 %v644, %v655
        %v657 = vlog2.pop %v650
        %v658 = vmul.f32 %v657, 0.6931472
        %v659 = vlog2.pop %v652
        %v660 = vmul.f32 %v659, 0.6931472
        %v661 = vlog2.pop %v654
        %v662 = vmul.f32 %v661, 0.6931472
        %v663 = vlog2.pop %v656
        %v664 = vmul.f32 %v663, 0.6931472
        %v665 = vmul.f32 %v658, 0.5
        %v666 = vmul.f32 %v660, 0.5
        %v667 = vmul.f32 %v662, 0.5
        %v668 = vmul.f32 %v664, 0.5
        %v669 = vmul.f32 %v626, %v665
        %v670 = vmul.f32 %v628, %v666
        %v671 = vmul.f32 %v630, %v667
        %v672 = vmul.f32 %v632, %v668
        %v673 = vtanh.pop %v669
        %v674 = vtanh.pop %v670
        %v675 = vtanh.pop %v671
        %v676 = vtanh.pop %v672
        %v677 = vrcp.pop %v621
        %v678 = vmul.f32 %v673, %v677
        %v679 = vrcp.pop %v622
        %v680 = vmul.f32 %v674, %v679
        %v681 = vrcp.pop %v623
        %v682 = vmul.f32 %v675, %v681
        %v683 = vrcp.pop %v624
        %v684 = vmul.f32 %v676, %v683
        %vm685 = vcmp.eq.f32.partialorder %v520, 0.0
        %vm686 = vcmp.eq.f32.partialorder %v525, 0.0
        %vm687 = vcmp.eq.f32.partialorder %v530, 0.0
        %vm688 = vcmp.eq.f32.partialorder %v535, 0.0
        %v689 = vsel %vm685, 0.0, %v678
        %v690 = vsel %vm686, 0.0, %v680
        %v691 = vsel %vm687, 0.0, %v682
        %v692 = vsel %vm688, 0.0, %v684
        %v693 = vmul.f32 %v689, %v621
        %v694 = vmul.f32 %v690, %v622
        %v695 = vmul.f32 %v691, %v623
        %v696 = vmul.f32 %v692, %v624
        %vm697 = vcmp.gt.f32.partialorder %v693, 0.996
        %vm698 = vcmp.gt.f32.partialorder %v694, 0.996
        %vm699 = vcmp.gt.f32.partialorder %v695, 0.996
        %vm700 = vcmp.gt.f32.partialorder %v696, 0.996
        %v701 = vmax.f32 %v693, 1e-15
        %v702 = vmax.f32 %v694, 1e-15
        %v703 = vmax.f32 %v695, 1e-15
        %v704 = vmax.f32 %v696, 1e-15
        %v705 = vrcp.pop %v701
        %v706 = vmul.f32 0.996, %v705
        %v707 = vrcp.pop %v702
        %v708 = vmul.f32 0.996, %v707
        %v709 = vrcp.pop %v703
        %v710 = vmul.f32 0.996, %v709
        %v711 = vrcp.pop %v704
        %v712 = vmul.f32 0.996, %v711
        %v713 = vmul.f32 %v689, %v706
        %v714 = vmul.f32 %v690, %v708
        %v715 = vmul.f32 %v691, %v710
        %v716 = vmul.f32 %v692, %v712
        %v717 = vsel %vm697, %v713, %v689
        %v718 = vsel %vm698, %v714, %v690
        %v719 = vsel %vm699, %v715, %v691
        %v720 = vsel %vm700, %v716, %v692
        %v721 = vmin.f32 %v693, 0.996
        %v722 = vmin.f32 %v694, 0.996
        %v723 = vmin.f32 %v695, 0.996
        %v724 = vmin.f32 %v696, 0.996
        %v725 = vmul.f32 %v721, %v721
        %v726 = vmul.f32 %v722, %v722
        %v727 = vmul.f32 %v723, %v723
        %v728 = vmul.f32 %v724, %v724
        %v729 = vmul.f32 %v717, %v577
        %v730 = vmul.f32 %v718, %v582
        %v731 = vmul.f32 %v719, %v587
        %v732 = vmul.f32 %v720, %v592
        %v733 = vmul.f32 %v729, 2.0
        %v734 = vmul.f32 %v730, 2.0
        %v735 = vmul.f32 %v731, 2.0
        %v736 = vmul.f32 %v732, 2.0
        %v737 = vadd.f32 %v733, 1.0
        %v738 = vadd.f32 %v734, 1.0
        %v739 = vadd.f32 %v735, 1.0
        %v740 = vadd.f32 %v736, 1.0
        %v741 = vstv %s240
        %v742 = vmul.f32 %v725, %v741
        %v743 = vmul.f32 %v726, %v741
        %v744 = vmul.f32 %v727, %v741
        %v745 = vmul.f32 %v728, %v741
        %v746 = vadd.f32 %v737, %v742
        %v747 = vadd.f32 %v738, %v743
        %v748 = vadd.f32 %v739, %v744
        %v749 = vadd.f32 %v740, %v745
        %v750 = vmax.f32 %v746, 1e-15
        %v751 = vmax.f32 %v747, 1e-15
        %v752 = vmax.f32 %v748, 1e-15
        %v753 = vmax.f32 %v749, 1e-15
        %v754 = vrcp.pop %v750
        %v755 = vmul.f32 1.0, %v754
        %v756 = vrcp.pop %v751
        %v757 = vmul.f32 1.0, %v756
        %v758 = vrcp.pop %v752
        %v759 = vmul.f32 1.0, %v758
        %v760 = vrcp.pop %v753
        %v761 = vmul.f32 1.0, %v760
        %v762 = vadd.f32 %v737, %v741
        %v763 = vadd.f32 %v738, %v741
        %v764 = vadd.f32 %v739, %v741
        %v765 = vadd.f32 %v740, %v741
        %v766 = vmul.f32 %v762, %v755
        %v767 = vmul.f32 %v763, %v757
        %v768 = vmul.f32 %v764, %v759
        %v769 = vmul.f32 %v765, %v761
        %v770 = vsub.f32 1.0, %v725
        %v771 = vsub.f32 1.0, %v726
        %v772 = vsub.f32 1.0, %v727
        %v773 = vsub.f32 1.0, %v728
        %v774 = vmul.f32 %v770, %v755
        %v775 = vmul.f32 %v771, %v757
        %v776 = vmul.f32 %v772, %v759
        %v777 = vmul.f32 %v773, %v761
        %v778 = vmul.f32 %v766, %v766
        %v779 = vmul.f32 %v767, %v767
        %v780 = vmul.f32 %v768, %v768
        %v781 = vmul.f32 %v769, %v769
        %v782 = vmul.f32 %v778, %v725
        %v783 = vmul.f32 %v779, %v726
        %v784 = vmul.f32 %v780, %v727
        %v785 = vmul.f32 %v781, %v728
        %v786 = vmul.f32 %v766, 2.0
        %v787 = vmul.f32 %v767, 2.0
        %v788 = vmul.f32 %v768, 2.0
        %v789 = vmul.f32 %v769, 2.0
        %v790 = vmul.f32 %v786, %v774
        %v791 = vmul.f32 %v787, %v775
        %v792 = vmul.f32 %v788, %v776
        %v793 = vmul.f32 %v789, %v777
        %v794 = vmul.f32 %v790, %v729
        %v795 = vmul.f32 %v791, %v730
        %v796 = vmul.f32 %v792, %v731
        %v797 = vmul.f32 %v793, %v732
        %v798 = vadd.f32 %v782, %v794
        %v799 = vadd.f32 %v783, %v795
        %v800 = vadd.f32 %v784, %v796
        %v801 = vadd.f32 %v785, %v797
        %v802 = vmul.f32 %v774, %v774
        %v803 = vmul.f32 %v775, %v775
        %v804 = vmul.f32 %v776, %v776
        %v805 = vmul.f32 %v777, %v777
        %v806 = vmul.f32 %v802, %v741
        %v807 = vmul.f32 %v803, %v741
        %v808 = vmul.f32 %v804, %v741
        %v809 = vmul.f32 %v805, %v741
        %v810 = vadd.f32 %v798, %v806
        %v811 = vadd.f32 %v799, %v807
        %v812 = vadd.f32 %v800, %v808
        %v813 = vadd.f32 %v801, %v809
        %v814 = vmax.f32 %v810, 0.0
        %v815 = vmax.f32 %v811, 0.0
        %v816 = vmax.f32 %v812, 0.0
        %v817 = vmax.f32 %v813, 0.0
        %v818 = vrsqrt.pop %v814
        %v819 = vmul.f32 %v814, %v818
        %vm820 = vcmp.eq.f32.partialorder %v814, inf
        %v821 = vsel %vm820, %v814, %v819
        %vm822 = vcmp.eq.f32.partialorder %v814, 0.0
        %v823 = vand.u32 %v814, 2147483648
        %v824 = vsel %vm822, %v823, %v821
        %v825 = vrsqrt.pop %v815
        %v826 = vmul.f32 %v815, %v825
        %vm827 = vcmp.eq.f32.partialorder %v815, inf
        %v828 = vsel %vm827, %v815, %v826
        %vm829 = vcmp.eq.f32.partialorder %v815, 0.0
        %v830 = vand.u32 %v815, 2147483648
        %v831 = vsel %vm829, %v830, %v828
        %v832 = vrsqrt.pop %v816
        %v833 = vmul.f32 %v816, %v832
        %vm834 = vcmp.eq.f32.partialorder %v816, inf
        %v835 = vsel %vm834, %v816, %v833
        %vm836 = vcmp.eq.f32.partialorder %v816, 0.0
        %v837 = vand.u32 %v816, 2147483648
        %v838 = vsel %vm836, %v837, %v835
        %v839 = vrsqrt.pop %v817
        %v840 = vmul.f32 %v817, %v839
        %vm841 = vcmp.eq.f32.partialorder %v817, inf
        %v842 = vsel %vm841, %v817, %v840
        %vm843 = vcmp.eq.f32.partialorder %v817, 0.0
        %v844 = vand.u32 %v817, 2147483648
        %v845 = vsel %vm843, %v844, %v842
        %v846 = vmax.f32 %v824, 1e-15
        %v847 = vmax.f32 %v831, 1e-15
        %v848 = vmax.f32 %v838, 1e-15
        %v849 = vmax.f32 %v845, 1e-15
        %vm850 = vcmp.gt.f32.partialorder %v846, 0.996
        %vm851 = vcmp.gt.f32.partialorder %v847, 0.996
        %vm852 = vcmp.gt.f32.partialorder %v848, 0.996
        %vm853 = vcmp.gt.f32.partialorder %v849, 0.996
        %v854 = vrcp.pop %v846
        %v855 = vmul.f32 0.996, %v854
        %v856 = vrcp.pop %v847
        %v857 = vmul.f32 0.996, %v856
        %v858 = vrcp.pop %v848
        %v859 = vmul.f32 0.996, %v858
        %v860 = vrcp.pop %v849
        %v861 = vmul.f32 0.996, %v860
        %v862 = vsel %vm850, %v855, 1.0
        %v863 = vsel %vm851, %v857, 1.0
        %v864 = vsel %vm852, %v859, 1.0
        %v865 = vsel %vm853, %v861, 1.0
        %v866 = vmin.f32 %v846, 0.996
        %v867 = vmin.f32 %v847, 0.996
        %v868 = vmin.f32 %v848, 0.996
        %v869 = vmin.f32 %v849, 0.996
        %v870 = vmax.f32 %v866, 1e-15
        %v871 = vmax.f32 %v867, 1e-15
        %v872 = vmax.f32 %v868, 1e-15
        %v873 = vmax.f32 %v869, 1e-15
        %v874 = vmax.f32 %v870, -0.9999999
        %v875 = vmax.f32 %v871, -0.9999999
        %v876 = vmax.f32 %v872, -0.9999999
        %v877 = vmax.f32 %v873, -0.9999999
        %v878 = vmin.f32 %v874, 0.9999999
        %v879 = vmin.f32 %v875, 0.9999999
        %v880 = vmin.f32 %v876, 0.9999999
        %v881 = vmin.f32 %v877, 0.9999999
        %v882 = vadd.f32 %v878, 1.0
        %v883 = vadd.f32 %v879, 1.0
        %v884 = vadd.f32 %v880, 1.0
        %v885 = vadd.f32 %v881, 1.0
        %v886 = vsub.f32 1.0, %v878
        %v887 = vsub.f32 1.0, %v879
        %v888 = vsub.f32 1.0, %v880
        %v889 = vsub.f32 1.0, %v881
        %v890 = vrcp.pop %v886
        %v891 = vmul.f32 %v882, %v890
        %v892 = vrcp.pop %v887
        %v893 = vmul.f32 %v883, %v892
        %v894 = vrcp.pop %v888
        %v895 = vmul.f32 %v884, %v894
        %v896 = vrcp.pop %v889
        %v897 = vmul.f32 %v885, %v896
        %v898 = vlog2.pop %v891
        %v899 = vmul.f32 %v898, 0.6931472
        %v900 = vlog2.pop %v893
        %v901 = vmul.f32 %v900, 0.6931472
        %v902 = vlog2.pop %v895
        %v903 = vmul.f32 %v902, 0.6931472
        %v904 = vlog2.pop %v897
        %v905 = vmul.f32 %v904, 0.6931472
        %v906 = vmul.f32 %v899, 0.5
        %v907 = vmul.f32 %v901, 0.5
        %v908 = vmul.f32 %v903, 0.5
        %v909 = vmul.f32 %v905, 0.5
        %v910 = vrcp.pop %v870
        %v911 = vmul.f32 %v906, %v910
        %v912 = vrcp.pop %v871
        %v913 = vmul.f32 %v907, %v912
        %v914 = vrcp.pop %v872
        %v915 = vmul.f32 %v908, %v914
        %v916 = vrcp.pop %v873
        %v917 = vmul.f32 %v909, %v916
        %v918 = vmul.f32 %v911, %v862
        %v919 = vmul.f32 %v913, %v863
        %v920 = vmul.f32 %v915, %v864
        %v921 = vmul.f32 %v917, %v865
        %v922 = vmul.f32 %v918, %v766
        %v923 = vmul.f32 %v919, %v767
        %v924 = vmul.f32 %v920, %v768
        %v925 = vmul.f32 %v921, %v769
        %v926 = vmul.f32 %v922, %v717
        %v927 = vmul.f32 %v923, %v718
        %v928 = vmul.f32 %v924, %v719
        %v929 = vmul.f32 %v925, %v720
        %v930 = vmul.f32 %v918, %v774
        %v931 = vmul.f32 %v919, %v775
        %v932 = vmul.f32 %v920, %v776
        %v933 = vmul.f32 %v921, %v777
        %v934 = vmul.f32 %v926, %v429
        %v935 = vmul.f32 %v926, %v431
        %v936 = vmul.f32 %v926, %v482
        %v937 = vmul.f32 %v926, %v484
        %v938 = vmul.f32 %v927, %v433
        %v939 = vmul.f32 %v927, %v435
        %v940 = vmul.f32 %v927, %v486
        %v941 = vmul.f32 %v927, %v488
        %v942 = vmul.f32 %v928, %v439
        %v943 = vmul.f32 %v928, %v441
        %v944 = vmul.f32 %v928, %v492
        %v945 = vmul.f32 %v928, %v494
        %v946 = vmul.f32 %v929, %v443
        %v947 = vmul.f32 %v929, %v445
        %v948 = vmul.f32 %v929, %v496
        %v949 = vmul.f32 %v929, %v498
        %v950 = vmul.f32 %v930, %v540
        %v951 = vmul.f32 %v930, %v544
        %v952 = vmul.f32 %v930, %v548
        %v953 = vmul.f32 %v930, %v552
        %v954 = vmul.f32 %v931, %v540
        %v955 = vmul.f32 %v931, %v544
        %v956 = vmul.f32 %v931, %v548
        %v957 = vmul.f32 %v931, %v552
        %v958 = vmul.f32 %v932, %v540
        %v959 = vmul.f32 %v932, %v544
        %v960 = vmul.f32 %v932, %v548
        %v961 = vmul.f32 %v932, %v552
        %v962 = vmul.f32 %v933, %v540
        %v963 = vmul.f32 %v933, %v544
        %v964 = vmul.f32 %v933, %v548
        %v965 = vmul.f32 %v933, %v552
        %v966 = vadd.f32 %v934, %v950
        %v967 = vadd.f32 %v935, %v951
        %v968 = vadd.f32 %v936, %v952
        %v969 = vadd.f32 %v937, %v953
        %v970 = vadd.f32 %v938, %v954
        %v971 = vadd.f32 %v939, %v955
        %v972 = vadd.f32 %v940, %v956
        %v973 = vadd.f32 %v941, %v957
        %v974 = vadd.f32 %v942, %v958
        %v975 = vadd.f32 %v943, %v959
        %v976 = vadd.f32 %v944, %v960
        %v977 = vadd.f32 %v945, %v961
        %v978 = vadd.f32 %v946, %v962
        %v979 = vadd.f32 %v947, %v963
        %v980 = vadd.f32 %v948, %v964
        %v981 = vadd.f32 %v949, %v965
        %v982 = vpack.c.bf16 %v970, %v966
        %v983 = vpack.c.bf16 %v971, %v967
        %v984 = vpack.c.bf16 %v972, %v968
        %v985 = vpack.c.bf16 %v973, %v969
        %v986 = vpack.c.bf16 %v978, %v974
        %v987 = vpack.c.bf16 %v979, %v975
        %v988 = vpack.c.bf16 %v980, %v976
        %v989 = vpack.c.bf16 %v981, %v977
        %v998 = vunpack.c.l.b16 %v982
        %v999 = vunpack.c.l.b16 %v983
        %v1000 = vunpack.c.l.b16 %v984
        %v1001 = vunpack.c.l.b16 %v985
        %v1002 = vunpack.c.h.b16 %v982
        %v1003 = vunpack.c.h.b16 %v983
        %v1004 = vunpack.c.h.b16 %v984
        %v1005 = vunpack.c.h.b16 %v985
        %v1006 = vunpack.c.l.b16 %v986
        %v1007 = vunpack.c.l.b16 %v987
        %v1008 = vunpack.c.l.b16 %v988
        %v1009 = vunpack.c.l.b16 %v989
        %v1010 = vunpack.c.h.b16 %v986
        %v1011 = vunpack.c.h.b16 %v987
        %v1012 = vunpack.c.h.b16 %v988
        %v1013 = vunpack.c.h.b16 %v989
        %v1014 = vpack.c.b16 %v999, %v998
        %v1015 = vpack.c.b16 %v1001, %v1000
        %v1016 = vpack.c.b16 %v1003, %v1002
        %v1017 = vpack.c.b16 %v1005, %v1004
        %v1018 = vpack.c.b16 %v1007, %v1006
        %v1019 = vpack.c.b16 %v1009, %v1008
        %v1020 = vpack.c.b16 %v1011, %v1010
        %v1021 = vpack.c.b16 %v1013, %v1012
        %1030 = vst [vmem:[%s231] sm:$0xff] %v1014
        %1031 = vst [vmem:[%s231 + $0x8] sm:$0xff] %v1015
        %1032 = vst [vmem:[%s231 + $0x10] sm:$0xff] %v1016
        %1033 = vst [vmem:[%s231 + $0x18] sm:$0xff] %v1017
        %1034 = vst [vmem:[%s231 + $0x20] sm:$0xff] %v1018
        %1035 = vst [vmem:[%s231 + $0x28] sm:$0xff] %v1019
        %1036 = vst [vmem:[%s231 + $0x30] sm:$0xff] %v1020
        %1037 = vst [vmem:[%s231 + $0x38] sm:$0xff] %v1021
        %s1038 = sand.u32 %s120, 1
        %s1039 = scalar_lea.sflag [#allocation5], %s1038
        %s1040 = sand.u32 %s120, 1
        %s1041 = smul.addr %s1040, 64
        %s1042 = scalar_lea.vmem [#allocation8], %s1041
        // Predicated region
        $region45: #{tpu_custom_call.1} parent=35 // pred_check
          %p1043 = pneg %p130
        $region46: #{tpu_custom_call.1} parent=35 // pred_check_branch
          %1045 = sbr.rel (%p1043) target = $region48
        $region47: #{tpu_custom_call.1} parent=35 // pred_region
          %s1046 = smul.u32 4, %s23
          %s1048 = ssub.s32 1024, 1024
          %1049 = vsyncadd %s1039, %s1048
          %s1050 = smul.addr %s1046, 4
          %s1051 = smul.addr %s1050, 64
          %s1052 = scalar_lea.hbm %s4, %s1051
          %s1053 = sshll.u32 %s1042, 4
          %s1054 = int_to_ptr.vmem [resolvable:$true] %s1053
          %1059 = dma.vmem_to_hbm [thread:$0]  %s1054, 1024, %s1052, %s1039, 256, 256, 16
        $region48: #{tpu_custom_call.1} parent=35 // pred_fallthru
          _
      $region36: #{tpu_custom_call.1} parent=5 // pred_fallthru
        _
      %p1060 = scmp.le.s32.totalorder 2, %s18
      // Predicated region
      $region49: #{tpu_custom_call.1} parent=5 // pred_check
        %p1061 = pneg %p1060
      $region50: #{tpu_custom_call.1} parent=5 // pred_check_branch
        %1063 = sbr.rel (%p1061) target = $region52
      $region51: #{tpu_custom_call.1} parent=5 // pred_region
        %s1064 = ssub.s32 %s18, 2
        // Predicated region
        $region53: #{tpu_custom_call.1} parent=51 // pred_check
          %p1065 = pneg %p136
        $region54: #{tpu_custom_call.1} parent=51 // pred_check_branch
          %1067 = sbr.rel (%p1065) target = $region56
        $region55: #{tpu_custom_call.1} parent=51 // pred_region
          %s1068 = sand.u32 %s121, 1
          %s1069 = scalar_lea.sflag [#allocation5], %s1068
          %s1070 = sand.u32 %s121, 1
          %s1071 = smul.addr %s1070, 64
          %s1072 = scalar_lea.vmem [#allocation8], %s1071
          %1073 = dma.done %s1069, 1024
        $region56: #{tpu_custom_call.1} parent=51 // pred_fallthru
          _
      $region52: #{tpu_custom_call.1} parent=5 // pred_fallthru
        _
    $region6: #{tpu_custom_call.1} parent=1 // loop_footer
      %s22 = sadd.s32 1, %s18
    $region7: #{tpu_custom_call.1} parent=1 // loop_footer_branch
      %17 = sbr.rel target = $region3
    $region8: #{tpu_custom_call.1} parent=1 // loop_exit
      _
    %1074 = vsyncpa [#allocation4], 1
    %s1075 = scalar_lea.sflag [#allocation4], 1
    %1076 = vsyncpa %s1075, 1
    %1077 = vsyncpa [#allocation7], 1
    %1078 = vsyncpa [#allocation5], 1
    %s1079 = scalar_lea.sflag [#allocation5], 1
    %1080 = vsyncpa %s1079, 1

</llo_original>
